<compile_context>
chip_gen: v7x
topology: tpu7x:2x2x1
jax: 0.10.0
libtpu: 0.0.40
codegen_flags: <defaults>
</compile_context>

<pallas_src>
import math

import jax
import jax.numpy as jnp
from jax.experimental import pallas as pl
from jax.experimental.pallas import tpu as pltpu


# ----------------------------------------------------------------------------
# Hardware query (guarded; falls back to conservative defaults)
# ----------------------------------------------------------------------------
def _tpu_vmem_and_cores():
    phys_vmem = 64 * 1024 * 1024          # conservative default (v7x per-TC VMEM)
    n_cores = 1
    try:
        info = pltpu.get_tpu_info()
        phys_vmem = int(getattr(info, "vmem_capacity_bytes", phys_vmem))
    except Exception:
        pass
    try:
        kind = jax.devices()[0].device_kind.lower()
        if "v7" in kind:                  # 2 TensorCores per chip on v7x
            n_cores = 2
    except Exception:
        pass
    return phys_vmem, n_cores


# ----------------------------------------------------------------------------
# Pallas kernel: out = x @ W + PE   for one block of tb*P rows
# ----------------------------------------------------------------------------
def _patch_embed_kernel(x_ref, w_ref, pe_ref, o_ref):
    # x_ref : (tm, patch_len)   tm = tb * num_patches rows (tb channel-batches)
    # w_ref : (patch_len, d_model)      value-embedding weight (full block)
    # pe_ref: (p_rep, d_model)  f32     positional table, p_rep = lcm(P, 8) rows
    # o_ref : (tm, d_model)
    tm, d = o_ref.shape
    p_rep = pe_ref.shape[0]
    proj = jnp.dot(x_ref[...], w_ref[...], preferred_element_type=jnp.float32)
    pe = pe_ref[...]                      # f32; added before the final cast
    g = tm // p_rep                       # tb is a multiple of unit => exact
    if g > 1:
        # Sublane-aligned split (p_rep % 8 == 0), broadcast PE over the groups.
        proj = (proj.reshape(g, p_rep, d) + pe[None]).reshape(tm, d)
    else:
        proj = proj + pe
    o_ref[...] = proj.astype(o_ref.dtype)


# ----------------------------------------------------------------------------
# Tile planning: size tm by output bytes / VMEM budget, chip-aware step count
# ----------------------------------------------------------------------------
def _plan_tiles(BN, P, patch_len, d_model, x_itemsize, out_itemsize,
                vmem_budget, min_steps, target_out_bytes):
    unit = 8 // math.gcd(P, 8)            # smallest tb with tb*P % 8 == 0
    bn_cb = pl.cdiv(BN, unit) * unit      # BN rounded up to a unit multiple

    # Resident VMEM per channel-batch in one grid step:
    #   double-buffered x tile + double-buffered out tile + f32 accumulator.
    per_cb = P * (2 * patch_len * x_itemsize + 2 * d_model * out_itemsize + d_model * 4)
    # Fixed residents: weight + PE (double-buffered, conservatively f32).
    fixed = 2 * (patch_len * d_model * 4 + unit * P * d_model * 4)

    budget = max(vmem_budget - fixed, per_cb * unit)
    tb_vmem = max(unit, (budget // per_cb) // unit * unit)

    # Aim for ~target_out_bytes output tiles (review: 2-8 MiB).
    tb_target = pl.cdiv(max(1, pl.cdiv(target_out_bytes, P * d_model * out_itemsize)),
                        unit) * unit

    tb = min(tb_vmem, tb_target)
    # Keep >= min_steps grid steps only when it buys parallelism (v7x megacore).
    if min_steps > 1 and bn_cb >= min_steps * unit:
        tb = min(tb, max(unit, (bn_cb // min_steps) // unit * unit))
    tb = max(unit, min(tb, bn_cb))
    return tb, unit


def patch_embedding_pallas(x_patches, weight_t, pe, *, target_out_bytes=4 * 1024 * 1024):
    """x_patches: [BN, P, patch_len], weight_t: [patch_len, d_model], pe: [P, d_model] (f32)."""
    BN, P, patch_len = x_patches.shape
    d_model = weight_t.shape[1]
    rows = BN * P

    out_dtype = x_patches.dtype
    x_itemsize = jnp.dtype(x_patches.dtype).itemsize
    out_itemsize = jnp.dtype(out_dtype).itemsize

    phys_vmem, n_cores = _tpu_vmem_and_cores()
    vmem_limit = max(32 * 1024 * 1024, (phys_vmem * 3) // 4)   # ~96 MiB v5e/v6e, ~48 MiB v7x
    min_steps = 4 if n_cores >= 2 else 1

    tb, unit = _plan_tiles(BN, P, patch_len, d_model, x_itemsize, out_itemsize,
                           (vmem_limit * 4) // 5, min_steps, target_out_bytes)
    assert tb % unit == 0
    tm = tb * P                         # rows per block (multiple of 8 and of P)
    p_rep = unit * P                    # PE repetition unit (multiple of 8)

    # Flatten channel-batches x patches to rows; blocks start on channel-batch
    # boundaries so the PE pattern aligns identically in every block.
    x2d = x_patches.reshape(rows, patch_len)
    # PE tiled only to lcm(P, 8) rows (a few KiB), kept f32.
    pe_rep = jnp.tile(pe.astype(jnp.float32), (unit, 1))       # (p_rep, d_model)

    cost = pl.CostEstimate(
        flops=2 * rows * patch_len * d_model,
        transcendentals=0,
        bytes_accessed=(rows * patch_len * x_itemsize
                        + rows * d_model * out_itemsize
                        + patch_len * d_model * jnp.dtype(weight_t.dtype).itemsize
                        + p_rep * d_model * 4),
    )

    grid = (pl.cdiv(BN, tb),)           # partial last block masked by Pallas
    out2d = pl.pallas_call(
        _patch_embed_kernel,
        out_shape=jax.ShapeDtypeStruct((rows, d_model), out_dtype),
        grid_spec=pltpu.PrefetchScalarGridSpec(
            num_scalar_prefetch=0,
            grid=grid,
            in_specs=[
                pl.BlockSpec((tm, patch_len), lambda b: (b, 0)),
                pl.BlockSpec((patch_len, d_model), lambda b: (0, 0)),   # resident
                pl.BlockSpec((p_rep, d_model), lambda b: (0, 0)),       # resident
            ],
            out_specs=pl.BlockSpec((tm, d_model), lambda b: (b, 0)),
        ),
        compiler_params=pltpu.CompilerParams(
            dimension_semantics=("parallel",),
            vmem_limit_bytes=int(vmem_limit),
        ),
        cost_estimate=cost,
    )(x2d, weight_t, pe_rep)

    return out2d.reshape(BN, P, d_model)


# ----------------------------------------------------------------------------
# Plain-JAX glue reproducing the PyTorch module's forward semantics
# ----------------------------------------------------------------------------
def make_positional_embedding(num_patches, d_model):
    """Sinusoidal PE identical to PositionalEmbedding (sliced to num_patches), f32."""
    position = jnp.arange(num_patches, dtype=jnp.float32)[:, None]            # (P, 1)
    div_term = jnp.exp(
        jnp.arange(0, d_model, 2, dtype=jnp.float32) * -(math.log(10000.0) / d_model)
    )
    pe = jnp.zeros((num_patches, d_model), dtype=jnp.float32)
    pe = pe.at[:, 0::2].set(jnp.sin(position * div_term))
    pe = pe.at[:, 1::2].set(jnp.cos(position * div_term))
    return pe


def patch_embedding_forward(x, weight, patch_len, stride, padding,
                            target_out_bytes=4 * 1024 * 1024):
    """
    x      : [B, n_vars, L]        (NCL input of the PyTorch module)
    weight : [d_model, patch_len]  (nn.Linear weight layout, bias=False)
    returns: (out [B*n_vars, num_patches, d_model], n_vars)
    """
    B, n_vars, L = x.shape
    d_model = weight.shape[0]

    # nn.ReplicationPad1d((0, padding)): replicate last element on the right.
    x_pad = jnp.pad(x, ((0, 0), (0, 0), (0, padding)), mode="edge")

    # unfold(dimension=-1, size=patch_len, step=stride)
    num_patches = (L + padding - patch_len) // stride + 1
    if stride == patch_len:
        # Non-overlapping patches: pure reshape, no gathered/duplicated HBM copy.
        x_patches = x_pad[:, :, : num_patches * patch_len].reshape(
            B * n_vars, num_patches, patch_len
        )
    else:
        starts = jnp.arange(num_patches) * stride                             # (P,)
        gather_idx = starts[:, None] + jnp.arange(patch_len)[None, :]         # (P, patch_len)
        x_patches = x_pad[:, :, gather_idx].reshape(B * n_vars, num_patches, patch_len)

    pe = make_positional_embedding(num_patches, d_model)                      # f32, tiny
    # Weight kept in the activation dtype (bf16 weights + f32 MXU accumulation
    # if x is bf16); pass f32 x (as in the module) for exact f32 nn.Linear.
    weight_t = weight.T.astype(x.dtype)                                       # (patch_len, d_model)

    out = patch_embedding_pallas(x_patches, weight_t, pe,
                                 target_out_bytes=target_out_bytes)
    # TODO(synk): nn.Dropout is identity at inference; training-mode dropout not implemented.
    return out, n_vars


# ----------------------------------------------------------------------------
if __name__ == "__main__":
    def run_case(B, n_vars, L, d_model, patch_len, stride, padding, key, **kw):
        k_x, k_w = jax.random.split(key)
        x = jax.random.normal(k_x, (B, n_vars, L), dtype=jnp.float32)
        # nn.Linear(patch_len, d_model, bias=False) weight layout: (d_model, patch_len)
        bound = 1.0 / math.sqrt(patch_len)
        weight = jax.random.uniform(
            k_w, (d_model, patch_len), minval=-bound, maxval=bound, dtype=jnp.float32
        )

        fwd = jax.jit(
            patch_embedding_forward,
            static_argnames=("patch_len", "stride", "padding", "target_out_bytes"),
        )
        out, nv = fwd(x, weight, patch_len=patch_len, stride=stride,
                      padding=padding, **kw)
        out = jax.block_until_ready(out)

        # Plain-JAX reference (same semantics as the PyTorch module).
        num_patches = (L + padding - patch_len) // stride + 1
        x_pad = jnp.pad(x, ((0, 0), (0, 0), (0, padding)), mode="edge")
        idx = (jnp.arange(num_patches) * stride)[:, None] + jnp.arange(patch_len)[None, :]
        ref = x_pad[:, :, idx].reshape(B * n_vars, num_patches, patch_len) @ weight.T
        ref = ref + make_positional_embedding(num_patches, d_model)[None]

        assert out.shape == (B * n_vars, num_patches, d_model), out.shape
        assert nv == n_vars
        assert jnp.allclose(out, ref, atol=1e-4, rtol=1e-4)

    key = jax.random.PRNGKey(0)
    k1, k2 = jax.random.split(key)

    # Case 1: small shapes consistent with the module (non-overlapping patches).
    run_case(B=2, n_vars=4, L=16, d_model=32, patch_len=8, stride=8, padding=8, key=k1)

    # Case 2: overlapping patches, BN not divisible by the tile, tiny forced
    # tiles -> exercises the gather path, multi-step grid, partial last block
    # and the in-kernel PE broadcast (g > 1).
    run_case(B=3, n_vars=5, L=37, d_model=32, patch_len=6, stride=3, padding=3,
             key=k2, target_out_bytes=5000)

    print("KERNEL_OK")
</pallas_src>

<mosaic_0001>
module attributes {stable_mosaic.version = 11 : i64} {
  func.func @_patch_embed_kernel(%arg0: i32, %arg1: memref<24x8xf32, #tpu.memory_space<vmem>>, %arg2: memref<8x32xf32, #tpu.memory_space<vmem>>, %arg3: memref<24x32xf32, #tpu.memory_space<vmem>>, %arg4: memref<24x32xf32, #tpu.memory_space<vmem>>) attributes {dimension_semantics = [#tpu.dimension_semantics<parallel>], iteration_bounds = array<i64: 1>, scalar_prefetch = 0 : i64, scratch_operands = 0 : i64, tpu.core_type = #tpu.core_type<tc>, window_params = [{transform_indices = @transform_0, window_bounds = array<i64: 24, 8>}, {pipeline_mode = #tpu.pipeline_mode<synchronous>, transform_indices = @transform_1, window_bounds = array<i64: 8, 32>}, {pipeline_mode = #tpu.pipeline_mode<synchronous>, transform_indices = @transform_2, window_bounds = array<i64: 24, 32>}, {transform_indices = @transform_3, window_bounds = array<i64: 24, 32>}]} {
    %c0 = arith.constant 0 : index
    %c0_0 = arith.constant 0 : index
    %0 = vector.load %arg1[%c0, %c0_0] : memref<24x8xf32, #tpu.memory_space<vmem>>, vector<24x8xf32>
    %c0_1 = arith.constant 0 : index
    %c0_2 = arith.constant 0 : index
    %1 = vector.load %arg2[%c0_1, %c0_2] : memref<8x32xf32, #tpu.memory_space<vmem>>, vector<8x32xf32>
    %cst = arith.constant dense<0.000000e+00> : vector<24x32xf32>
    %2 = tpu.matmul %0, %1, %cst {dimension_numbers = #tpu.dot_dimension_numbers<[1], [0], [0], [1], [0, 0, 1, 1], [], []>} : vector<24x8xf32>, vector<8x32xf32>, vector<24x32xf32> -> vector<24x32xf32>
    %c0_3 = arith.constant 0 : index
    %c0_4 = arith.constant 0 : index
    %3 = vector.load %arg3[%c0_3, %c0_4] : memref<24x32xf32, #tpu.memory_space<vmem>>, vector<24x32xf32>
    %4 = arith.addf %2, %3 : vector<24x32xf32>
    %c0_5 = arith.constant 0 : index
    %c0_6 = arith.constant 0 : index
    %5 = vector.load %arg4[%c0_5, %c0_6] : memref<24x32xf32, #tpu.memory_space<vmem>>, vector<24x32xf32>
    tpu.vector_store %arg4[%c0_5, %c0_6], %4 {strides = array<i32>} : memref<24x32xf32, #tpu.memory_space<vmem>>, vector<24x32xf32>,
    return
  }
  func.func @transform_0(%arg0: i32) -> (i32, i32) {
    %c0_i32 = arith.constant 0 : i32
    %c0_i32_0 = arith.constant 0 : i32
    return %arg0, %c0_i32 : i32, i32
  }
  func.func @transform_1(%arg0: i32) -> (i32, i32) {
    %c0_i32 = arith.constant 0 : i32
    %c0_i32_0 = arith.constant 0 : i32
    %c0_i32_1 = arith.constant 0 : i32
    return %c0_i32, %c0_i32_0 : i32, i32
  }
  func.func @transform_2(%arg0: i32) -> (i32, i32) {
    %c0_i32 = arith.constant 0 : i32
    %c0_i32_0 = arith.constant 0 : i32
    %c0_i32_1 = arith.constant 0 : i32
    return %c0_i32, %c0_i32_0 : i32, i32
  }
  func.func @transform_3(%arg0: i32) -> (i32, i32) {
    %c0_i32 = arith.constant 0 : i32
    %c0_i32_0 = arith.constant 0 : i32
    return %arg0, %c0_i32 : i32, i32
  }
}

</mosaic_0001>

<llo_original>
// kernel: tile.9
$region0: #{tile.9}
  %s0 = inlined_call_operand.vmem [shape: f32[8,3,32], index: 0, kind: input, shape index: {}]
  %s1 = inlined_call_operand.vmem [shape: f32[24,32], index: 1, kind: output, shape index: {}]
  $region1: #{tile.9} parent=0
    #allocation0 [shape = 'u8[32768]{0}', space=vmem, size = 0x8000, scoped, tag = 'scoped mem for input reshape']
    %s3 = sshllo.u32 0, 4
    %s4 = smul.addr 4, 7
    %s5 = scalar_lea.vmem %s0, %s4
    %v6 = vld [vmem:[%s5] sm:%s3]
    %s7 = scalar_lea.vmem [#allocation0], 56
    %8 = vst [vmem:[%s7] sm:%s3] %v6
    %s9 = smul.addr 4, 6
    %s10 = scalar_lea.vmem %s0, %s9
    %v11 = vld [vmem:[%s10] sm:%s3]
    %s12 = scalar_lea.vmem [#allocation0], 48
    %13 = vst [vmem:[%s12] sm:%s3] %v11
    %s14 = smul.addr 4, 5
    %s15 = scalar_lea.vmem %s0, %s14
    %v16 = vld [vmem:[%s15] sm:%s3]
    %s17 = scalar_lea.vmem [#allocation0], 40
    %18 = vst [vmem:[%s17] sm:%s3] %v16
    %s19 = smul.addr 4, 4
    %s20 = scalar_lea.vmem %s0, %s19
    %v21 = vld [vmem:[%s20] sm:%s3]
    %s22 = scalar_lea.vmem [#allocation0], 32
    %23 = vst [vmem:[%s22] sm:%s3] %v21
    %s24 = smul.addr 4, 3
    %s25 = scalar_lea.vmem %s0, %s24
    %v26 = vld [vmem:[%s25] sm:%s3]
    %s27 = scalar_lea.vmem [#allocation0], 24
    %28 = vst [vmem:[%s27] sm:%s3] %v26
    %s29 = smul.addr 4, 2
    %s30 = scalar_lea.vmem %s0, %s29
    %v31 = vld [vmem:[%s30] sm:%s3]
    %s32 = scalar_lea.vmem [#allocation0], 16
    %33 = vst [vmem:[%s32] sm:%s3] %v31
    %s34 = scalar_lea.vmem %s0, 4
    %v35 = vld [vmem:[%s34] sm:%s3]
    %s36 = scalar_lea.vmem [#allocation0], 8
    %37 = vst [vmem:[%s36] sm:%s3] %v35
    %v38 = vld [vmem:[%s0] sm:%s3]
    %39 = vst [vmem:[#allocation0] sm:%s3] %v38
    %v40 = vld [vmem:[#allocation0] sm:$0x7]
    %vm41 = vcmask 261120
    %42 = vst.msk [vmem:[%s1] sm:$0x7] %vm41, %v40
    %s43 = scalar_lea.vmem [#allocation0], 8
    %v44 = vld [vmem:[%s43] sm:$0x7]
    %vm45 = vcmask 261120
    %s46 = scalar_lea.vmem %s1, 3
    %47 = vst.msk [vmem:[%s46] sm:$0x7] %vm45, %v44
    %s48 = scalar_lea.vmem [#allocation0], 16
    %v49 = vld [vmem:[%s48] sm:$0x7]
    %vm50 = vcmask 261120
    %s51 = scalar_lea.vmem %s1, 6
    %52 = vst.msk [vmem:[%s51] sm:$0x7] %vm50, %v49
    %s53 = scalar_lea.vmem [#allocation0], 24
    %v54 = vld [vmem:[%s53] sm:$0x7]
    %vm55 = vcmask 261120
    %s56 = scalar_lea.vmem %s1, 9
    %57 = vst.msk [vmem:[%s56] sm:$0x7] %vm55, %v54
    %s58 = scalar_lea.vmem [#allocation0], 32
    %v59 = vld [vmem:[%s58] sm:$0x7]
    %vm60 = vcmask 261120
    %s61 = scalar_lea.vmem %s1, 12
    %62 = vst.msk [vmem:[%s61] sm:$0x7] %vm60, %v59
    %s63 = scalar_lea.vmem [#allocation0], 40
    %v64 = vld [vmem:[%s63] sm:$0x7]
    %vm65 = vcmask 261120
    %s66 = scalar_lea.vmem %s1, 15
    %67 = vst.msk [vmem:[%s66] sm:$0x7] %vm65, %v64
    %s68 = scalar_lea.vmem [#allocation0], 48
    %v69 = vld [vmem:[%s68] sm:$0x7]
    %vm70 = vcmask 261120
    %s71 = scalar_lea.vmem %s1, 18
    %72 = vst.msk [vmem:[%s71] sm:$0x7] %vm70, %v69
    %s73 = scalar_lea.vmem [#allocation0], 56
    %v74 = vld [vmem:[%s73] sm:$0x7]
    %vm75 = vcmask 261120
    %s76 = scalar_lea.vmem %s1, 21
    %77 = vst.msk [vmem:[%s76] sm:$0x7] %vm75, %v74

// kernel: patch_embedding_forward.1
$region0: #{patch_embedding_forward.1}
  #allocation0 [shape = 'u32[]', space=smem, size = 0x4, offset = 0x4, fixed_abs, tag = 'smem constant byte address 0x4 - core index']
  #allocation1 [shape = 'u32[144,128]{1,0:T(1,128)}', space=vmem, size = 0x12000, scoped, tag = 'internal scratch']
  %s0 = inlined_call_operand.vmem [shape: f32[24,8], index: 0, kind: input, shape index: {}]
  %s1 = inlined_call_operand.vmem [shape: f32[8,32], index: 1, kind: input, shape index: {}]
  %s2 = inlined_call_operand.vmem [shape: f32[24,32], index: 2, kind: input, shape index: {}]
  %s3 = inlined_call_operand.vmem [shape: f32[24,32], index: 3, kind: output, shape index: {}]
  %s4 = sld [smem:[#allocation0]]
  $region22: #{patch_embedding_forward.1} parent=0
    _
  %s6 = ssub.s32 1, %s4
  %s7 = scalar_select 0, %s6, %s4
  // Predicated region
  $region2: #{patch_embedding_forward.1} parent=0 // pred_check
    _
  $region3: #{patch_embedding_forward.1} parent=0 // pred_check_branch
    %9 = sbr.rel (0) target = $region5
  $region4: #{patch_embedding_forward.1} parent=0 // pred_region
    _
  $region5: #{patch_embedding_forward.1} parent=0 // pred_fallthru
    _
  // Predicated region
  $region6: #{patch_embedding_forward.1} parent=0 // pred_check
    _
  $region7: #{patch_embedding_forward.1} parent=0 // pred_check_branch
    %11 = sbr.rel (0) target = $region9
  $region8: #{patch_embedding_forward.1} parent=0 // pred_region
    _
  $region9: #{patch_embedding_forward.1} parent=0 // pred_fallthru
    _
  // Predicated region
  $region10: #{patch_embedding_forward.1} parent=0 // pred_check
    _
  $region11: #{patch_embedding_forward.1} parent=0 // pred_check_branch
    %13 = sbr.rel (0) target = $region13
  $region12: #{patch_embedding_forward.1} parent=0 // pred_region
    _
  $region13: #{patch_embedding_forward.1} parent=0 // pred_fallthru
    _
  %v14 = vld [vmem:[%s0] sm:$0xff]
  %v15 = vld [vmem:[%s0 + $0x8] sm:$0xff]
  %v16 = vld [vmem:[%s0 + $0x10] sm:$0xff]
  %v17 = vld [vmem:[%s1] sm:$0xff]
  %v18 = vld [vmem:[%s2] sm:$0xff]
  %v19 = vld [vmem:[%s2 + $0x8] sm:$0xff]
  %v20 = vld [vmem:[%s2 + $0x10] sm:$0xff]
  %vm21 = vcmask 64512
  %v23 = vsel %vm21, %v14, 0
  %v26 = vsel %vm21, %v15, 0
  %v29 = vsel %vm21, %v16, 0
  %31 = vmatprep.subr.mxu0 0.0
  %32 = vmatpush1.msra.mxu0 %v17
  %33 = vmatprep.subr.mxu0 0.0
  %34 = vmatpush1.msra.mxu0 0.0
  %35 = vmatprep.subr.mxu0 0.0
  %36 = vmatpush1.msra.mxu0 0.0
  %37 = vmatprep.subr.mxu0 0.0
  %38 = vmatpush1.msra.mxu0 0.0
  %39 = vmatprep.subr.mxu0 0.0
  %40 = vmatpush1.msra.mxu0 0.0
  %41 = vmatprep.subr.mxu0 0.0
  %42 = vmatpush1.msra.mxu0 0.0
  %43 = vmatprep.subr.mxu0 0.0
  %44 = vmatpush1.msra.mxu0 0.0
  %45 = vmatprep.subr.mxu0 0.0
  %46 = vmatpush1.msra.mxu0 0.0
  %47 = vmatprep.subr.mxu0 0.0
  %48 = vmatpush1.msra.mxu0 0.0
  %49 = vmatprep.subr.mxu0 0.0
  %50 = vmatpush1.msra.mxu0 0.0
  %51 = vmatprep.subr.mxu0 0.0
  %52 = vmatpush1.msra.mxu0 0.0
  %53 = vmatprep.subr.mxu0 0.0
  %54 = vmatpush1.msra.mxu0 0.0
  %55 = vmatprep.subr.mxu0 0.0
  %56 = vmatpush1.msra.mxu0 0.0
  %57 = vmatprep.subr.mxu0 0.0
  %58 = vmatpush1.msra.mxu0 0.0
  %59 = vmatprep.subr.mxu0 0.0
  %60 = vmatpush1.msra.mxu0 0.0
  %61 = vmatprep.subr.mxu0 0.0
  %62 = vmatpush1.msra.mxu0 0.0
  %63 = vmatprep.subr.mxu0 0.0
  %64 = vmatpush1.msra.mxu0 0.0
  %65 = vmatprep.subr.mxu0 0.0
  %66 = vmatpush1.msra.mxu0 0.0
  %67 = vmatprep.subr.mxu0 0.0
  %68 = vmatpush1.msra.mxu0 0.0
  %69 = vmatprep.subr.mxu0 0.0
  %70 = vmatpush1.msra.mxu0 0.0
  %71 = vmatprep.subr.mxu0 0.0
  %72 = vmatpush1.msra.mxu0 0.0
  %73 = vmatprep.subr.mxu0 0.0
  %74 = vmatpush1.msra.mxu0 0.0
  %75 = vmatprep.subr.mxu0 0.0
  %76 = vmatpush1.msra.mxu0 0.0
  %77 = vmatprep.subr.mxu0 0.0
  %78 = vmatpush1.msra.mxu0 0.0
  %79 = vmatprep.subr.mxu0 0.0
  %80 = vmatpush1.msra.mxu0 0.0
  %81 = vmatprep.subr.mxu0 0.0
  %82 = vmatpush1.msra.mxu0 0.0
  %83 = vmatprep.subr.mxu0 0.0
  %84 = vmatpush1.msra.mxu0 0.0
  %85 = vmatprep.subr.mxu0 0.0
  %86 = vmatpush1.msra.mxu0 0.0
  %87 = vmatprep.subr.mxu0 0.0
  %88 = vmatpush1.msra.mxu0 0.0
  %89 = vmatprep.subr.mxu0 0.0
  %90 = vmatpush1.msra.mxu0 0.0
  %91 = vmatprep.subr.mxu0 0.0
  %92 = vmatpush1.msra.mxu0 0.0
  %93 = vmatprep.subr.mxu0 0.0
  %94 = vmatpush1.msra.mxu0 0.0
  %95 = vmatprep.mubr.f32.mxu0 0.0
  %96 = vmatmul.mubr.f32.gmra.mrb[0].mxu0 %v23
  %v97 = vpop.f32.mrb[0].mxu0
  %v98 = vadd.f32 %v18, %v97
  %v99 = vpop.f32.mrb[0].mxu0
  %100 = vmatprep.mubr.f32.mxu0 0.0
  %101 = vmatmul.mubr.f32.gmra.mrb[0].mxu0 %v26
  %v102 = vpop.f32.mrb[0].mxu0
  %v103 = vadd.f32 %v19, %v102
  %v104 = vpop.f32.mrb[0].mxu0
  %105 = vmatprep.mubr.f32.mxu0 0.0
  %106 = vmatmul.mubr.f32.gmra.mrb[0].mxu0 %v29
  %v107 = vpop.f32.mrb[0].mxu0
  %v108 = vadd.f32 %v20, %v107
  %v109 = vpop.f32.mrb[0].mxu0
  %110 = vdwg.mxu0
  %vm111 = vcmask 261120
  %112 = vst.msk [vmem:[%s3] sm:$0xff] %vm111, %v98
  %113 = vst.msk [vmem:[%s3 + $0x8] sm:$0xff] %vm111, %v103
  %114 = vst.msk [vmem:[%s3 + $0x10] sm:$0xff] %vm111, %v108
  // Predicated region
  $region14: #{patch_embedding_forward.1} parent=0 // pred_check
    _
  $region15: #{patch_embedding_forward.1} parent=0 // pred_check_branch
    %116 = sbr.rel (0) target = $region17
  $region16: #{patch_embedding_forward.1} parent=0 // pred_region
    _
  $region17: #{patch_embedding_forward.1} parent=0 // pred_fallthru
    _
  // Predicated region
  $region18: #{patch_embedding_forward.1} parent=0 // pred_check
    _
  $region19: #{patch_embedding_forward.1} parent=0 // pred_check_branch
    %118 = sbr.rel (0) target = $region21
  $region20: #{patch_embedding_forward.1} parent=0 // pred_region
    _
  $region21: #{patch_embedding_forward.1} parent=0 // pred_fallthru
    _

</llo_original>
